<compile_context>
chip_gen: v5e
topology: v5e:2x2
jax: 0.10.0
libtpu: 0.0.40
codegen_flags: <defaults>
</compile_context>

<pallas_src>
import math
import functools

import jax
import jax.numpy as jnp
from jax import lax
from jax.experimental import pallas as pl
from jax.experimental.pallas import tpu as pltpu


# ---------------------------------------------------------------------------
# Tiled linear projection:  y = x @ w.T + b
# ---------------------------------------------------------------------------
def _linear_kernel(x_ref, w_ref, b_ref, o_ref, acc_ref):
    # x: (tm, tk)   w: (tn, tk)   b: (1, tn)   o: (tm, tn)
    k = pl.program_id(2)

    @pl.when(k == 0)
    def _():
        acc_ref[...] = jnp.zeros_like(acc_ref)

    # contract x dim 1 with w dim 1  (== x @ w.T, weight used in native layout)
    acc_ref[...] += lax.dot_general(
        x_ref[...], w_ref[...],
        dimension_numbers=(((1,), (1,)), ((), ())),
        preferred_element_type=jnp.float32,
    )

    @pl.when(k == pl.num_programs(2) - 1)
    def _():
        o_ref[...] = (acc_ref[...] + b_ref[...]).astype(o_ref.dtype)


def _pick_tile(dim, cap, quantum):
    """Largest tile <= cap that divides dim and respects the (8,128) quantum,
    or the full dim when it already fits."""
    if dim <= cap:
        return dim
    t = (cap // quantum) * quantum
    while t >= quantum:
        if dim % t == 0:
            return t
        t -= quantum
    return dim  # fallback: full dim (always legal)


def linear(x, w, b, *, tm_cap=256, tn_cap=256, tk_cap=512):
    """x:(M,K) @ w:(N,K).T + b:(N,) -> (M,N) via a tiled, pipelined Pallas matmul."""
    M, K = x.shape
    N, K2 = w.shape
    assert K == K2

    tm = _pick_tile(M, tm_cap, 8)     # second-to-last dims -> 8 quantum
    tn = _pick_tile(N, tn_cap, 128)   # last dims -> 128 quantum
    tk = _pick_tile(K, tk_cap, 128)

    b2 = b.reshape(1, N)
    grid = (M // tm, N // tn, K // tk)

    return pl.pallas_call(
        _linear_kernel,
        out_shape=jax.ShapeDtypeStruct((M, N), jnp.float32),
        grid=grid,
        in_specs=[
            pl.BlockSpec((tm, tk), lambda i, j, k: (i, k)),
            pl.BlockSpec((tn, tk), lambda i, j, k: (j, k)),
            pl.BlockSpec((1, tn), lambda i, j, k: (0, j)),
        ],
        out_specs=pl.BlockSpec((tm, tn), lambda i, j, k: (i, j)),
        scratch_shapes=[pltpu.VMEM((tm, tn), jnp.float32)],
        compiler_params=pltpu.CompilerParams(
            dimension_semantics=("parallel", "parallel", "arbitrary"),
            vmem_limit_bytes=32 * 1024 * 1024,
        ),
    )(x, w, b2)


# ---------------------------------------------------------------------------
# Attention core: rotary + QK^T + softmax + context, one batch element per grid step.
# Reads the fused QKV slab directly in (B, T, 3E) layout (lane-dense 3E last dim),
# writes context in (B, T, E) layout.
# ---------------------------------------------------------------------------
def _make_attn_kernel(num_heads, head_dim, scale, with_cov):
    Dh = head_dim
    half = Dh // 2

    def kernel(proj_ref, cos_ref, sin_ref, *out_refs):
        ctx_ref = out_refs[0]
        cov_ref = out_refs[1] if with_cov else None

        # rotary tables, split once into halves (shared across heads)
        c1 = cos_ref[:, :half]
        c2 = cos_ref[:, half:]
        s1 = sin_ref[:, :half]
        s2 = sin_ref[:, half:]

        def rope(x):
            # equivalent to x*cos + rotate_half(x)*sin, built from half-width slices
            x1 = x[:, :half]
            x2 = x[:, half:]
            return jnp.concatenate([x1 * c1 - x2 * s1, x2 * c2 + x1 * s2], axis=-1)

        # TODO(synk): for long T, tile flash-style over the key axis with online softmax
        #             instead of holding the full (T, T) score matrix per head.
        for h in range(num_heads):
            base = h * 3 * Dh
            q = proj_ref[0, :, base: base + Dh]              # (T, Dh)
            k = proj_ref[0, :, base + Dh: base + 2 * Dh]     # (T, Dh)
            v = proj_ref[0, :, base + 2 * Dh: base + 3 * Dh]  # (T, Dh)

            qr = rope(q) * scale      # fold softmax scale into the (T, Dh) query
            kr = rope(k)

            # scores = qr @ kr.T  (contract on Dh, no explicit transpose)
            s = lax.dot_general(
                qr, kr, dimension_numbers=(((1,), (1,)), ((), ())),
                preferred_element_type=jnp.float32,
            )                                                 # (T, T)

            m = jnp.max(s, axis=-1, keepdims=True)
            e = jnp.exp(s - m)
            denom = jnp.sum(e, axis=-1, keepdims=True)
            p = e * pl.reciprocal(denom, approx=True)

            if with_cov:
                cov_ref[0, h] = p

            # TODO(synk): dropout is skipped (module used dropout=0.0 / eval mode).
            ctx = jnp.dot(p, v, preferred_element_type=jnp.float32)   # (T, Dh)
            ctx_ref[0, :, h * Dh: (h + 1) * Dh] = ctx.astype(ctx_ref.dtype)

    return kernel


def attention_core(proj3, cos, sin, num_heads, scale, with_cov=True):
    """proj3: (B, T, 3E) fused QKV; cos/sin: (T, Dh).
    Returns ctx (B, T, E) and optionally probs (B, H, T, T)."""
    B, T, threeE = proj3.shape
    E = threeE // 3
    Dh = E // num_heads

    kernel = _make_attn_kernel(num_heads, Dh, scale, with_cov)

    in_specs = [
        pl.BlockSpec((1, T, threeE), lambda b: (b, 0, 0)),
        pl.BlockSpec((T, Dh), lambda b: (0, 0)),
        pl.BlockSpec((T, Dh), lambda b: (0, 0)),
    ]
    ctx_shape = jax.ShapeDtypeStruct((B, T, E), jnp.float32)
    ctx_spec = pl.BlockSpec((1, T, E), lambda b: (b, 0, 0))

    if with_cov:
        out_shape = (ctx_shape,
                     jax.ShapeDtypeStruct((B, num_heads, T, T), jnp.float32))
        out_specs = (ctx_spec,
                     pl.BlockSpec((1, num_heads, T, T), lambda b: (b, 0, 0, 0)))
    else:
        out_shape = ctx_shape
        out_specs = ctx_spec

    outs = pl.pallas_call(
        kernel,
        out_shape=out_shape,
        grid=(B,),
        in_specs=in_specs,
        out_specs=out_specs,
        compiler_params=pltpu.CompilerParams(
            dimension_semantics=("parallel",),
            vmem_limit_bytes=32 * 1024 * 1024,
        ),
    )(proj3, cos, sin)

    if with_cov:
        return outs[0], outs[1]
    return outs, None


# ---------------------------------------------------------------------------
# Module-level forward (mirrors SelfMultiheadAttn.forward with no masks,
# dropout=0.0, eval mode, non-incremental, rotary_pos_enc=True)
# ---------------------------------------------------------------------------
def self_multihead_attn_forward(inputs, cos, sin, in_w, in_b, out_w, out_b,
                                num_heads, return_coverage=True):
    # TODO(synk): key_padding_mask / attn_mask and incremental decoding are not implemented.
    T, B, E = inputs.shape
    H = num_heads
    Dh = E // H
    scale = Dh ** (-0.5)

    # Single narrow (E-wide) layout adjustment at the boundary; all wide slabs
    # (3E proj, E context) stay in (B*T, ·) layout with no further transposes.
    x_bt = jnp.transpose(inputs, (1, 0, 2)).reshape(B * T, E)

    # Input projection: (B*T, E) @ (3E, E).T + bias  -- tiled Pallas matmul
    proj = linear(x_bt, in_w, in_b)                 # (B*T, 3E), columns = (H, 3, Dh)
    proj3 = proj.reshape(B, T, 3 * E)               # free reshape

    # Attention core (rotary + scores + softmax + context) -- Pallas kernel, grid over B
    # TODO(synk): on v6e/v7x, casting the matmul operands to bf16 (f32 accumulation)
    #             would roughly double MXU throughput; kept f32 to match the module dtype.
    ctx, probs = attention_core(proj3, cos, sin, H, scale, with_cov=return_coverage)

    # Output projection -- tiled Pallas matmul, reads the (B*T, E) context directly
    out2d = linear(ctx.reshape(B * T, E), out_w, out_b)
    out = jnp.transpose(out2d.reshape(B, T, E), (1, 0, 2))   # back to (T, B, E)

    coverage = probs  # already (B, H, T, T)
    return out, coverage


# Pure-JAX reference (same math) for a correctness check.
def _reference(inputs, cos, sin, in_w, in_b, out_w, out_b, H):
    T, B, E = inputs.shape
    Dh = E // H
    scale = Dh ** (-0.5)
    proj = inputs.reshape(T * B, E) @ in_w.T + in_b
    proj = proj.reshape(T, B * H, 3, Dh)
    q, k, v = proj[:, :, 0, :], proj[:, :, 1, :], proj[:, :, 2, :]

    def rot(x):
        x1, x2 = x[..., : Dh // 2], x[..., Dh // 2:]
        return jnp.concatenate([-x2, x1], axis=-1)

    q = q * cos[:, None, :] + rot(q) * sin[:, None, :]
    k = k * cos[:, None, :] + rot(k) * sin[:, None, :]
    q = jnp.transpose(q, (1, 0, 2))
    k = jnp.transpose(k, (1, 0, 2))
    v = jnp.transpose(v, (1, 0, 2))
    s = jnp.einsum("btd,bsd->bts", q, k) * scale
    p = jax.nn.softmax(s, axis=-1)
    ctx = jnp.einsum("bts,bsd->btd", p, v)
    ctx = jnp.transpose(ctx, (1, 0, 2)).reshape(T * B, E)
    out = (ctx @ out_w.T + out_b).reshape(T, B, E)
    return out, p.reshape(B, H, T, T)


if __name__ == "__main__":
    # Small shapes: seq T=8, batch B=2, embed E=64, heads H=4 (head_dim=16)
    T, B, E, H = 8, 2, 64, 4
    Dh = E // H

    key = jax.random.PRNGKey(0)
    k_in, k_w1, k_w2 = jax.random.split(key, 3)

    # Deterministic parameter init mirroring reset_parameters():
    std_ = math.sqrt(2.0 / (E + E))
    in_proj_weight = std_ * jax.random.normal(k_w1, (3 * E, E), dtype=jnp.float32)
    out_proj_weight = std_ * jax.random.normal(k_w2, (E, E), dtype=jnp.float32)
    in_proj_bias = jnp.zeros((3 * E,), dtype=jnp.float32)
    out_proj_bias = jnp.zeros((E,), dtype=jnp.float32)

    inputs = jax.random.normal(k_in, (T, B, E), dtype=jnp.float32)

    # Rotary positional encoding tables (the module's `pos` argument).
    inv_freq = 1.0 / (10000.0 ** (jnp.arange(0, Dh, 2, dtype=jnp.float32) / Dh))
    t = jnp.arange(T, dtype=jnp.float32)
    freqs = jnp.outer(t, inv_freq)                         # (T, Dh/2)
    emb = jnp.concatenate([freqs, freqs], axis=-1)         # (T, Dh)
    cos, sin = jnp.cos(emb), jnp.sin(emb)

    out, coverage = self_multihead_attn_forward(
        inputs, cos, sin, in_proj_weight, in_proj_bias,
        out_proj_weight, out_proj_bias, H, return_coverage=True,
    )
    out = jax.block_until_ready(out)
    coverage = jax.block_until_ready(coverage)

    out_ref, cov_ref = _reference(
        inputs, cos, sin, in_proj_weight, in_proj_bias,
        out_proj_weight, out_proj_bias, H,
    )
    assert out.shape == (T, B, E) and coverage.shape == (B, H, T, T)
    assert jnp.allclose(out, out_ref, rtol=1e-2, atol=1e-2)
    assert jnp.allclose(coverage, cov_ref, rtol=1e-2, atol=1e-2)

    print("KERNEL_OK")
</pallas_src>

<mosaic_0001>
module attributes {stable_mosaic.version = 11 : i64} {
  func.func @_linear_kernel(%arg0: i32, %arg1: i32, %arg2: i32, %arg3: memref<16x64xf32, #tpu.memory_space<vmem>>, %arg4: memref<192x64xf32, #tpu.memory_space<vmem>>, %arg5: memref<1x192xf32, #tpu.memory_space<vmem>>, %arg6: memref<16x192xf32, #tpu.memory_space<vmem>>, %arg7: memref<16x192xf32, #tpu.memory_space<vmem>>) attributes {dimension_semantics = [#tpu.dimension_semantics<parallel>, #tpu.dimension_semantics<parallel>, #tpu.dimension_semantics<arbitrary>], iteration_bounds = array<i64: 1, 1, 1>, scalar_prefetch = 0 : i64, scratch_operands = 1 : i64, tpu.core_type = #tpu.core_type<tc>, window_params = [{transform_indices = @transform_0, window_bounds = array<i64: 16, 64>}, {transform_indices = @transform_1, window_bounds = array<i64: 192, 64>}, {transform_indices = @transform_2, window_bounds = array<i64: 1, 192>}, {transform_indices = @transform_3, window_bounds = array<i64: 16, 192>}]} {
    %c0_i32 = arith.constant 0 : i32
    %0 = arith.cmpi eq, %arg2, %c0_i32 : i32
    %1 = arith.extui %0 : i1 to i32
    %c0_i32_0 = arith.constant 0 : i32
    %2 = arith.cmpi ne, %1, %c0_i32_0 : i32
    scf.if %2 {
      %cst_10 = arith.constant 0.000000e+00 : f32
      %12 = vector.broadcast %cst_10 : f32 to vector<16x192xf32>
      %c0_11 = arith.constant 0 : index
      %c0_12 = arith.constant 0 : index
      %13 = vector.load %arg7[%c0_11, %c0_12] : memref<16x192xf32, #tpu.memory_space<vmem>>, vector<16x192xf32>
      tpu.vector_store %arg7[%c0_11, %c0_12], %12 {strides = array<i32>} : memref<16x192xf32, #tpu.memory_space<vmem>>, vector<16x192xf32>,
    } else {
    }
    %c0 = arith.constant 0 : index
    %c0_1 = arith.constant 0 : index
    %3 = vector.load %arg7[%c0, %c0_1] : memref<16x192xf32, #tpu.memory_space<vmem>>, vector<16x192xf32>
    %c0_2 = arith.constant 0 : index
    %c0_3 = arith.constant 0 : index
    %4 = vector.load %arg3[%c0_2, %c0_3] : memref<16x64xf32, #tpu.memory_space<vmem>>, vector<16x64xf32>
    %c0_4 = arith.constant 0 : index
    %c0_5 = arith.constant 0 : index
    %5 = vector.load %arg4[%c0_4, %c0_5] : memref<192x64xf32, #tpu.memory_space<vmem>>, vector<192x64xf32>
    %cst = arith.constant dense<0.000000e+00> : vector<16x192xf32>
    %6 = tpu.matmul %4, %5, %cst {dimension_numbers = #tpu.dot_dimension_numbers<[1], [1], [0], [0], [0, 0, 1, 0], [], []>} : vector<16x64xf32>, vector<192x64xf32>, vector<16x192xf32> -> vector<16x192xf32>
    %7 = arith.addf %3, %6 : vector<16x192xf32>
    %c0_6 = arith.constant 0 : index
    %c0_7 = arith.constant 0 : index
    %8 = vector.load %arg7[%c0_6, %c0_7] : memref<16x192xf32, #tpu.memory_space<vmem>>, vector<16x192xf32>
    tpu.vector_store %arg7[%c0_6, %c0_7], %7 {strides = array<i32>} : memref<16x192xf32, #tpu.memory_space<vmem>>, vector<16x192xf32>,
    %c0_i32_8 = arith.constant 0 : i32
    %9 = arith.cmpi eq, %arg2, %c0_i32_8 : i32
    %10 = arith.extui %9 : i1 to i32
    %c0_i32_9 = arith.constant 0 : i32
    %11 = arith.cmpi ne, %10, %c0_i32_9 : i32
    scf.if %11 {
      %c0_10 = arith.constant 0 : index
      %c0_11 = arith.constant 0 : index
      %12 = vector.load %arg7[%c0_10, %c0_11] : memref<16x192xf32, #tpu.memory_space<vmem>>, vector<16x192xf32>
      %c0_12 = arith.constant 0 : index
      %c0_13 = arith.constant 0 : index
      %13 = vector.load %arg5[%c0_12, %c0_13] : memref<1x192xf32, #tpu.memory_space<vmem>>, vector<1x192xf32>
      %14 = vector.broadcast %13 : vector<1x192xf32> to vector<16x192xf32>
      %15 = arith.addf %12, %14 : vector<16x192xf32>
      %c0_14 = arith.constant 0 : index
      %c0_15 = arith.constant 0 : index
      %16 = vector.load %arg6[%c0_14, %c0_15] : memref<16x192xf32, #tpu.memory_space<vmem>>, vector<16x192xf32>
      tpu.vector_store %arg6[%c0_14, %c0_15], %15 {strides = array<i32>} : memref<16x192xf32, #tpu.memory_space<vmem>>, vector<16x192xf32>,
    } else {
    }
    return
  }
  func.func @transform_0(%arg0: i32, %arg1: i32, %arg2: i32) -> (i32, i32) {
    %c0_i32 = arith.constant 0 : i32
    return %arg0, %arg2 : i32, i32
  }
  func.func @transform_1(%arg0: i32, %arg1: i32, %arg2: i32) -> (i32, i32) {
    %c0_i32 = arith.constant 0 : i32
    return %arg1, %arg2 : i32, i32
  }
  func.func @transform_2(%arg0: i32, %arg1: i32, %arg2: i32) -> (i32, i32) {
    %c0_i32 = arith.constant 0 : i32
    %c0_i32_0 = arith.constant 0 : i32
    return %c0_i32, %arg1 : i32, i32
  }
  func.func @transform_3(%arg0: i32, %arg1: i32, %arg2: i32) -> (i32, i32) {
    %c0_i32 = arith.constant 0 : i32
    return %arg0, %arg1 : i32, i32
  }
}

</mosaic_0001>

<llo_original>
// kernel: tpu_custom_call.1
$region0: #{tpu_custom_call.1}
  #allocation0 [shape = 'u32[]', space=smem, size = 0x4, offset = 0x4, fixed_abs, tag = 'smem constant byte address 0x4 - core index']
  #allocation1 [shape = 'u32[72,128]{1,0:T(1,128)}', space=vmem, size = 0x9000, scoped, tag = 'internal scratch']
  #allocation2 [shape = 'f32[16,192]{1,0:T(8,128)}', space=vmem, size = 0x4000, scoped, tag = 'scratch operand']
  %s0 = inlined_call_operand.vmem [shape: f32[16,64], index: 0, kind: input, shape index: {}]
  %s1 = inlined_call_operand.vmem [shape: f32[192,64], index: 1, kind: input, shape index: {}]
  %s2 = inlined_call_operand.vmem [shape: f32[1,192], index: 2, kind: input, shape index: {}]
  %s3 = inlined_call_operand.hbm [shape: f32[16,192], index: 3, kind: output, shape index: {}]
  %s4 = sld [smem:[#allocation0]]
  $region30: #{tpu_custom_call.1} parent=0
    _
  %s6 = ssub.s32 1, %s4
  %s7 = scalar_select 0, %s6, %s4
  $region1: #{tpu_custom_call.1} parent=0
    #allocation3 [shape = 'u8[16384]{0}', space=vmem, size = 0x4000, scoped, tag = 'output window, operand 0, single buffered']
    #allocation4 [shape = 's32[1]{0}', space=sflag, size = 0x4, scoped, tag = 'scoped memory for tpu_custom_call.1']
    %8 = vsyncpa [#allocation4], 0
    // Predicated region
    $region2: #{tpu_custom_call.1} parent=1 // pred_check
      _
    $region3: #{tpu_custom_call.1} parent=1 // pred_check_branch
      %10 = sbr.rel (0) target = $region5
    $region4: #{tpu_custom_call.1} parent=1 // pred_region
      _
    $region5: #{tpu_custom_call.1} parent=1 // pred_fallthru
      _
    // Predicated region
    $region6: #{tpu_custom_call.1} parent=1 // pred_check
      _
    $region7: #{tpu_custom_call.1} parent=1 // pred_check_branch
      %12 = sbr.rel (0) target = $region9
    $region8: #{tpu_custom_call.1} parent=1 // pred_region
      _
    $region9: #{tpu_custom_call.1} parent=1 // pred_fallthru
      _
    // Predicated region
    $region10: #{tpu_custom_call.1} parent=1 // pred_check
      _
    $region11: #{tpu_custom_call.1} parent=1 // pred_check_branch
      %14 = sbr.rel (0) target = $region13
    $region12: #{tpu_custom_call.1} parent=1 // pred_region
      _
    $region13: #{tpu_custom_call.1} parent=1 // pred_fallthru
      _
    %p15 = scmp.eq.s32.totalorder 0, 0
    // Predicated region
    $region14: #{tpu_custom_call.1} parent=1 // pred_check
      %p16 = pneg %p15
    $region15: #{tpu_custom_call.1} parent=1 // pred_check_branch
      %18 = sbr.rel (%p16) target = $region17
    $region16: #{tpu_custom_call.1} parent=1 // pred_region
      %19 = vst [vmem:[#allocation2] sm:$0xff] 0.0
      %vm20 = vcmask 523264
      %21 = vst.msk [vmem:[#allocation2 + $0x8] sm:$0xff] %vm20, 0.0
      %22 = vst [vmem:[#allocation2 + $0x10] sm:$0xff] 0.0
      %23 = vst.msk [vmem:[#allocation2 + $0x18] sm:$0xff] %vm20, 0.0
    $region17: #{tpu_custom_call.1} parent=1 // pred_fallthru
      _
    %v24 = vld [vmem:[#allocation2] sm:$0xff]
    %v25 = vld [vmem:[#allocation2 + $0x8] sm:$0xff]
    %v26 = vld [vmem:[#allocation2 + $0x10] sm:$0xff]
    %v27 = vld [vmem:[#allocation2 + $0x18] sm:$0xff]
    %v28 = vld [vmem:[%s0] sm:$0xff]
    %v29 = vld [vmem:[%s0 + $0x8] sm:$0xff]
    %v30 = vld [vmem:[%s1] sm:$0xff]
    %v31 = vld [vmem:[%s1 + $0x8] sm:$0xff]
    %v32 = vld [vmem:[%s1 + $0x10] sm:$0xff]
    %v33 = vld [vmem:[%s1 + $0x18] sm:$0xff]
    %v34 = vld [vmem:[%s1 + $0x20] sm:$0xff]
    %v35 = vld [vmem:[%s1 + $0x28] sm:$0xff]
    %v36 = vld [vmem:[%s1 + $0x30] sm:$0xff]
    %v37 = vld [vmem:[%s1 + $0x38] sm:$0xff]
    %v38 = vld [vmem:[%s1 + $0x40] sm:$0xff]
    %v39 = vld [vmem:[%s1 + $0x48] sm:$0xff]
    %v40 = vld [vmem:[%s1 + $0x50] sm:$0xff]
    %v41 = vld [vmem:[%s1 + $0x58] sm:$0xff]
    %v42 = vld [vmem:[%s1 + $0x60] sm:$0xff]
    %v43 = vld [vmem:[%s1 + $0x68] sm:$0xff]
    %v44 = vld [vmem:[%s1 + $0x70] sm:$0xff]
    %v45 = vld [vmem:[%s1 + $0x78] sm:$0xff]
    %v46 = vld [vmem:[%s1 + $0x80] sm:$0xff]
    %v47 = vld [vmem:[%s1 + $0x88] sm:$0xff]
    %v48 = vld [vmem:[%s1 + $0x90] sm:$0xff]
    %v49 = vld [vmem:[%s1 + $0x98] sm:$0xff]
    %v50 = vld [vmem:[%s1 + $0xa0] sm:$0xff]
    %v51 = vld [vmem:[%s1 + $0xa8] sm:$0xff]
    %v52 = vld [vmem:[%s1 + $0xb0] sm:$0xff]
    %v53 = vld [vmem:[%s1 + $0xb8] sm:$0xff]
    %vm54 = vcmask 523264
    %v56 = vsel %vm54, %v28, 0
    %v59 = vsel %vm54, %v29, 0
    %v62 = vsel %vm54, %v30, 0
    %v65 = vsel %vm54, %v31, 0
    %v68 = vsel %vm54, %v32, 0
    %v71 = vsel %vm54, %v33, 0
    %v74 = vsel %vm54, %v34, 0
    %v77 = vsel %vm54, %v35, 0
    %v80 = vsel %vm54, %v36, 0
    %v83 = vsel %vm54, %v37, 0
    %v86 = vsel %vm54, %v38, 0
    %v89 = vsel %vm54, %v39, 0
    %v92 = vsel %vm54, %v40, 0
    %v95 = vsel %vm54, %v41, 0
    %v98 = vsel %vm54, %v42, 0
    %v101 = vsel %vm54, %v43, 0
    %v104 = vsel %vm54, %v44, 0
    %v107 = vsel %vm54, %v45, 0
    %v110 = vsel %vm54, %v46, 0
    %v113 = vsel %vm54, %v47, 0
    %v116 = vsel %vm54, %v48, 0
    %v119 = vsel %vm54, %v49, 0
    %v122 = vsel %vm54, %v50, 0
    %v125 = vsel %vm54, %v51, 0
    %v128 = vsel %vm54, %v52, 0
    %v131 = vsel %vm54, %v53, 0
    %133 = vmatpush.xpose.msra.mxu0 %v107
    %134 = vmatpush.xpose.msra.mxu0 %v104
    %135 = vmatpush.xpose.msra.mxu0 %v101
    %136 = vmatpush.xpose.msra.mxu0 %v98
    %137 = vmatpush.xpose.msra.mxu0 %v95
    %138 = vmatpush.xpose.msra.mxu0 %v92
    %139 = vmatpush.xpose.msra.mxu0 %v89
    %140 = vmatpush.xpose.msra.mxu0 %v86
    %141 = vmatpush.xpose.msra.mxu0 %v83
    %142 = vmatpush.xpose.msra.mxu0 %v80
    %143 = vmatpush.xpose.msra.mxu0 %v77
    %144 = vmatpush.xpose.msra.mxu0 %v74
    %145 = vmatpush.xpose.msra.mxu0 %v71
    %146 = vmatpush.xpose.msra.mxu0 %v68
    %147 = vmatpush.xpose.msra.mxu0 %v65
    %148 = vmatpush.xpose.msra.mxu0 %v62
    %149 = vmatmul.f32.gmra.mxu0 %v56
    %v150 = vpop.f32.mrf.mxu0
    %v151 = vadd.f32 0.0, %v150
    %152 = vmatmul.f32.gmra.mxu0 %v59
    %v153 = vpop.f32.mrf.mxu0
    %v154 = vadd.f32 0.0, %v153
    %155 = vdwg.mxu0
    %156 = vmatpush.xpose.msra.mxu0 0.0
    %157 = vmatpush.xpose.msra.mxu0 0.0
    %158 = vmatpush.xpose.msra.mxu0 0.0
    %159 = vmatpush.xpose.msra.mxu0 0.0
    %160 = vmatpush.xpose.msra.mxu0 0.0
    %161 = vmatpush.xpose.msra.mxu0 0.0
    %162 = vmatpush.xpose.msra.mxu0 0.0
    %163 = vmatpush.xpose.msra.mxu0 0.0
    %164 = vmatpush.xpose.msra.mxu0 %v131
    %165 = vmatpush.xpose.msra.mxu0 %v128
    %166 = vmatpush.xpose.msra.mxu0 %v125
    %167 = vmatpush.xpose.msra.mxu0 %v122
    %168 = vmatpush.xpose.msra.mxu0 %v119
    %169 = vmatpush.xpose.msra.mxu0 %v116
    %170 = vmatpush.xpose.msra.mxu0 %v113
    %171 = vmatpush.xpose.msra.mxu0 %v110
    %172 = vmatmul.f32.gmra.mxu0 %v56
    %v173 = vpop.f32.mrf.mxu0
    %v174 = vadd.f32 0.0, %v173
    %175 = vmatmul.f32.gmra.mxu0 %v59
    %v176 = vpop.f32.mrf.mxu0
    %v177 = vadd.f32 0.0, %v176
    %178 = vdwg.mxu0
    %v179 = vadd.f32 %v24, %v151
    %v180 = vadd.f32 %v25, %v174
    %v181 = vadd.f32 %v26, %v154
    %v182 = vadd.f32 %v27, %v177
    %183 = vst [vmem:[#allocation2] sm:$0xff] %v179
    %184 = vst.msk [vmem:[#allocation2 + $0x8] sm:$0xff] %vm54, %v180
    %185 = vst [vmem:[#allocation2 + $0x10] sm:$0xff] %v181
    %186 = vst.msk [vmem:[#allocation2 + $0x18] sm:$0xff] %vm54, %v182
    // Predicated region
    $region18: #{tpu_custom_call.1} parent=1 // pred_check
      %p187 = pneg %p15
    $region19: #{tpu_custom_call.1} parent=1 // pred_check_branch
      %189 = sbr.rel (%p187) target = $region21
    $region20: #{tpu_custom_call.1} parent=1 // pred_region
      %v190 = vld [vmem:[#allocation2] sm:$0xff]
      %v191 = vld [vmem:[#allocation2 + $0x8] sm:$0xff]
      %v192 = vld [vmem:[#allocation2 + $0x10] sm:$0xff]
      %v193 = vld [vmem:[#allocation2 + $0x18] sm:$0xff]
      %v194 = vld [vmem:[%s2] sm:$0x3]
      %v196 = vperm.slane %v194, 0
      %v197 = vperm.slane %v194, 1
      %v200 = vadd.f32 %v190, %v196
      %v201 = vadd.f32 %v191, %v197
      %v202 = vadd.f32 %v192, %v196
      %v203 = vadd.f32 %v193, %v197
      %204 = vst [vmem:[#allocation3] sm:$0xff] %v200
      %205 = vst.msk [vmem:[#allocation3 + $0x8] sm:$0xff] %vm54, %v201
      %206 = vst [vmem:[#allocation3 + $0x10] sm:$0xff] %v202
      %207 = vst.msk [vmem:[#allocation3 + $0x18] sm:$0xff] %vm54, %v203
    $region21: #{tpu_custom_call.1} parent=1 // pred_fallthru
      _
    // Predicated region
    $region22: #{tpu_custom_call.1} parent=1 // pred_check
      _
    $region23: #{tpu_custom_call.1} parent=1 // pred_check_branch
      %209 = sbr.rel (0) target = $region25
    $region24: #{tpu_custom_call.1} parent=1 // pred_region
      %211 = vsyncadd [#allocation4], 0
      %s212 = sshll.u32 [#allocation3], 4
      %s213 = int_to_ptr.vmem [resolvable:$true] %s212
      %s214 = sshll.u32 %s3, 4
      %s215 = int_to_ptr.hbm [resolvable:$true] %s214
      %220 = dma.vmem_to_hbm [thread:$0]  %s213, 512, %s215, [#allocation4], 256, 256, 16
    $region25: #{tpu_custom_call.1} parent=1 // pred_fallthru
      _
    // Predicated region
    $region26: #{tpu_custom_call.1} parent=1 // pred_check
      _
    $region27: #{tpu_custom_call.1} parent=1 // pred_check_branch
      %222 = sbr.rel (0) target = $region29
    $region28: #{tpu_custom_call.1} parent=1 // pred_region
      %224 = dma.done [#allocation4], 512
    $region29: #{tpu_custom_call.1} parent=1 // pred_fallthru
      _
    %225 = vsyncpa [#allocation4], 1

</llo_original>
